<compile_context>
chip_gen: v7x
topology: tpu7x:2x2x1
jax: 0.10.0
libtpu: 0.0.40
codegen_flags: <defaults>
</compile_context>

<pallas_src>
import functools
import math

import jax
import jax.numpy as jnp
from jax.experimental import pallas as pl
from jax.experimental.pallas import tpu as pltpu

_LANE = 128
_SUBLANE = 8


def _cdiv(a, b):
    return -(-a // b)


def _round_up(a, b):
    return _cdiv(a, b) * b


def _predict(pr, activation, threshold):
    """f32 'prediction' tensor under the metric's activation/threshold.

    When activation == 'sigmoid' and a threshold is given, the threshold is
    folded through the (monotone) sigmoid: compare raw logits against
    logit(threshold).  The compare stays in the input dtype; only the 0/1
    result is widened to f32.
    """
    if activation == "sigmoid" and threshold is not None:
        logit_t = math.log(threshold / (1.0 - threshold))
        return (pr > logit_t).astype(jnp.float32)
    pr = pr.astype(jnp.float32)
    if activation == "sigmoid":           # only used when threshold is None
        pr = jax.nn.sigmoid(pr)           # EUP path, no manual divide
    if threshold is not None:
        pr = (pr > jnp.float32(threshold)).astype(jnp.float32)
    return pr


def _iou_partial_kernel(pr_ref, gt_ref, out_ref, acc_i, acc_p, acc_g, *,
                        threshold, activation, steps, num_blocks, nb, guarded):
    """Accumulates (intersection, sum_pr, sum_gt) vector partials per chunk."""
    p = pl.program_id(0)
    j = pl.program_id(1)

    @pl.when(j == 0)
    def _init():
        acc_i[...] = jnp.zeros_like(acc_i)
        acc_p[...] = jnp.zeros_like(acc_p)
        acc_g[...] = jnp.zeros_like(acc_g)

    def _accumulate():
        pred = _predict(pr_ref[...], activation, threshold)   # (nb, 128) f32
        gt = gt_ref[...].astype(jnp.float32)                   # widen AFTER load
        r = nb // _SUBLANE
        # Single streaming pass: fold the row dimension down to one (8, 128)
        # accumulator per quantity (pure vreg add-tree, no cross-lane work and
        # no scalar transfers per step).
        acc_i[...] += jnp.sum((pred * gt).reshape(r, _SUBLANE, _LANE), axis=0)
        acc_p[...] += jnp.sum(pred.reshape(r, _SUBLANE, _LANE), axis=0)
        acc_g[...] += jnp.sum(gt.reshape(r, _SUBLANE, _LANE), axis=0)

    if guarded:
        # Grid has a few more slots than blocks (num_blocks % p_chunks != 0);
        # those slots are clamped to the last block by the index_map and must
        # not contribute.
        @pl.when(p * steps + j < num_blocks)
        def _():
            _accumulate()
    else:
        _accumulate()

    @pl.when(j == pl.num_programs(1) - 1)
    def _finalize():
        out_ref[0, 0] = acc_i[...]
        out_ref[0, 1] = acc_p[...]
        out_ref[0, 2] = acc_g[...]


def iou_metric(y_pr, y_gt, eps=1e-7, threshold=0.5, activation="sigmoid",
               block_rows=8192, num_parallel=2):
    """Pallas equivalent of IoUMetric.forward. Returns a scalar IoU."""
    if activation not in ("sigmoid", None, "none"):
        # TODO(synk): 'softmax2d' (cross-channel softmax) is not implemented in
        # this flattened streaming layout.
        raise NotImplementedError(f"activation={activation!r} not supported")
    activation = None if activation == "none" else activation

    pr_flat = y_pr.reshape(-1)
    gt_flat = y_gt.reshape(-1)

    # Keep gt narrow in HBM: never up-cast floats in the wrapper; bool masks go
    # to bf16 (exact for 0/1); other integer types keep exactness via f32.
    if gt_flat.dtype == jnp.bool_:
        gt_flat = gt_flat.astype(jnp.bfloat16)
    elif not jnp.issubdtype(gt_flat.dtype, jnp.floating):
        gt_flat = gt_flat.astype(jnp.float32)

    total = int(pr_flat.shape[0])
    # Minimum sublane multiple for the packed input dtypes (8 f32, 16 bf16, 32 i8).
    row_align = max(32 // pr_flat.dtype.itemsize,
                    32 // gt_flat.dtype.itemsize, _SUBLANE)
    rem = total % _LANE
    rows = _cdiv(total, _LANE)

    if rem or rows < row_align:
        # Only when the element count is not 128-aligned (or the input is tiny):
        # pad to whole rows.  Pad values are chosen so padded elements contribute
        # 0 to every partial sum.  128-aligned inputs take the zero-copy path.
        # TODO(synk): this branch still materializes one padded copy of the input.
        rows = max(_round_up(rows, row_align), row_align)
        pad = rows * _LANE - total
        if activation is None and threshold is None:
            pr_pad = 0
        elif jnp.issubdtype(pr_flat.dtype, jnp.floating):
            pr_pad = -jnp.inf            # pred -> 0 under sigmoid/threshold
        else:
            pr_pad = jnp.iinfo(pr_flat.dtype).min
        pr_flat = jnp.pad(pr_flat, (0, pad), constant_values=pr_pad)
        gt_flat = jnp.pad(gt_flat, (0, pad), constant_values=0)

    pr2 = pr_flat.reshape(rows, _LANE)   # free reshape, no copy
    gt2 = gt_flat.reshape(rows, _LANE)

    # ---- block sizing: biggest block that keeps 2 inputs x 2 pipeline buffers
    # comfortably inside the 32 MiB scoped-VMEM limit requested below. --------
    bytes_per_row = _LANE * (pr2.dtype.itemsize + gt2.dtype.itemsize)
    vmem_budget = 24 * 1024 * 1024
    nb_cap = max(row_align, vmem_budget // (2 * bytes_per_row))
    nb = max(row_align, (min(int(block_rows), nb_cap) // row_align) * row_align)
    nb = min(nb, (rows // row_align) * row_align)      # at least one full block

    num_blocks = rows // nb                            # full blocks only
    rows_main = num_blocks * nb
    p_chunks = max(1, min(int(num_parallel), num_blocks))
    steps = _cdiv(num_blocks, p_chunks)
    guarded = (p_chunks * steps != num_blocks)

    if guarded:
        last = num_blocks - 1
        in_map = lambda p, j: (jnp.minimum(p * steps + j, last), 0)
    else:
        in_map = lambda p, j: (p * steps + j, 0)

    kernel = functools.partial(
        _iou_partial_kernel, threshold=threshold, activation=activation,
        steps=steps, num_blocks=num_blocks, nb=nb, guarded=guarded)

    partials = pl.pallas_call(
        kernel,
        out_shape=jax.ShapeDtypeStruct((p_chunks, 3, _SUBLANE, _LANE),
                                       jnp.float32),
        grid=(p_chunks, steps),
        in_specs=[
            pl.BlockSpec((nb, _LANE), in_map),
            pl.BlockSpec((nb, _LANE), in_map),
        ],
        out_specs=pl.BlockSpec((1, 3, _SUBLANE, _LANE),
                               lambda p, j: (p, 0, 0, 0)),
        scratch_shapes=[pltpu.VMEM((_SUBLANE, _LANE), jnp.float32)
                        for _ in range(3)],
        compiler_params=pltpu.CompilerParams(
            dimension_semantics=("parallel", "arbitrary"),
            vmem_limit_bytes=32 * 1024 * 1024),
    )(pr2, gt2)

    sums = jnp.sum(partials, axis=(0, 2, 3))   # (3,) = [inter, sum_pr, sum_gt]
    intersection, sum_pr, sum_gt = sums[0], sums[1], sums[2]

    # Remainder rows (< nb of them) that don't fill a whole block: summed by a
    # tiny JAX-side slice instead of padding/copying the full arrays.
    if rows_main < rows:
        t_pred = _predict(pr2[rows_main:], activation, threshold)
        t_gt = gt2[rows_main:].astype(jnp.float32)
        intersection = intersection + jnp.sum(t_pred * t_gt)
        sum_pr = sum_pr + jnp.sum(t_pred)
        sum_gt = sum_gt + jnp.sum(t_gt)

    union = sum_gt + sum_pr - intersection + eps
    return (intersection + eps) / union


class IoUMetric:
    __name__ = "iou"

    def __init__(self, eps=1e-07, threshold=0.5, activation="sigmoid"):
        self.eps = eps
        self.threshold = threshold
        self.activation = activation

    def __call__(self, y_pr, y_gt):
        return iou_metric(y_pr, y_gt, self.eps, self.threshold, self.activation)

    forward = __call__


def _iou_ref(y_pr, y_gt, eps=1e-7, threshold=0.5, activation="sigmoid"):
    """Pure-JAX reference mirroring the PyTorch functional iou."""
    pr = y_pr.astype(jnp.float32)
    gt = y_gt.astype(jnp.float32)
    if activation == "sigmoid":
        pr = jax.nn.sigmoid(pr)
    if threshold is not None:
        pr = (pr > threshold).astype(jnp.float32)
    inter = jnp.sum(gt * pr)
    union = jnp.sum(gt) + jnp.sum(pr) - inter + eps
    return (inter + eps) / union


if __name__ == "__main__":
    key = jax.random.PRNGKey(0)
    k1, k2, k3, k4, k5, k6, k7, k8 = jax.random.split(key, 8)
    metric = IoUMetric(eps=1e-7, threshold=0.5, activation="sigmoid")

    # Case 1: small, 128-aligned, f32 logits (B=2, C=4, 16x16) -- zero-copy path.
    y_pr = jax.random.normal(k1, (2, 4, 16, 16), dtype=jnp.float32)
    y_gt = (jax.random.uniform(k2, (2, 4, 16, 16)) > 0.5).astype(jnp.float32)
    out = jax.block_until_ready(metric(y_pr, y_gt))
    ref = _iou_ref(y_pr, y_gt)
    assert jnp.allclose(out, ref, rtol=1e-6, atol=1e-6), (out, ref)

    # Case 2: bf16 logits streamed without up-cast + non-128-aligned element
    # count (exercises the small pad + threshold-fold on packed bf16).
    y_pr2 = jax.random.normal(k3, (2, 3, 7, 9), dtype=jnp.bfloat16)
    y_gt2 = (jax.random.uniform(k4, (2, 3, 7, 9)) > 0.5).astype(jnp.float32)
    out2 = jax.block_until_ready(metric(y_pr2, y_gt2))
    ref2 = _iou_ref(y_pr2, y_gt2)
    assert jnp.allclose(out2, ref2, rtol=1e-5, atol=1e-5), (out2, ref2)

    # Case 3: big enough for the parallel-chunk axis and multi-step
    # accumulation (grid = (2, 8) with small forced blocks).
    y_pr3 = jax.random.normal(k5, (4, 8, 64, 64), dtype=jnp.float32)
    y_gt3 = (jax.random.uniform(k6, (4, 8, 64, 64)) > 0.5).astype(jnp.float32)
    out3 = jax.block_until_ready(
        iou_metric(y_pr3, y_gt3, block_rows=64, num_parallel=2))
    ref3 = _iou_ref(y_pr3, y_gt3)
    assert jnp.allclose(out3, ref3, rtol=1e-6, atol=1e-6), (out3, ref3)

    # Case 4: 128-aligned but row count not a multiple of the block -> no pad,
    # guarded (clamped) grid slot + JAX-side remainder rows.
    y_pr4 = jax.random.normal(k7, (4, 13, 128), dtype=jnp.float32)
    y_gt4 = (jax.random.uniform(k8, (4, 13, 128)) > 0.5).astype(jnp.float32)
    out4 = jax.block_until_ready(
        iou_metric(y_pr4, y_gt4, block_rows=16, num_parallel=2))
    ref4 = _iou_ref(y_pr4, y_gt4)
    assert jnp.allclose(out4, ref4, rtol=1e-6, atol=1e-6), (out4, ref4)

    print("KERNEL_OK")
</pallas_src>

<mosaic_0001>
module attributes {stable_mosaic.version = 11 : i64} {
  func.func @_iou_partial_kernel(%arg0: i32, %arg1: i32, %arg2: memref<16x128xf32, #tpu.memory_space<vmem>>, %arg3: memref<16x128xf32, #tpu.memory_space<vmem>>, %arg4: memref<1x3x8x128xf32, #tpu.memory_space<vmem>>, %arg5: memref<8x128xf32, #tpu.memory_space<vmem>>, %arg6: memref<8x128xf32, #tpu.memory_space<vmem>>, %arg7: memref<8x128xf32, #tpu.memory_space<vmem>>) attributes {dimension_semantics = [#tpu.dimension_semantics<parallel>, #tpu.dimension_semantics<arbitrary>], iteration_bounds = array<i64: 1, 1>, scalar_prefetch = 0 : i64, scratch_operands = 3 : i64, tpu.core_type = #tpu.core_type<tc>, window_params = [{transform_indices = @transform_0, window_bounds = array<i64: 16, 128>}, {transform_indices = @transform_1, window_bounds = array<i64: 16, 128>}, {transform_indices = @transform_2, window_bounds = array<i64: 1, 3, 8, 128>}]} {
    %c0_i32 = arith.constant 0 : i32
    %0 = arith.cmpi eq, %arg1, %c0_i32 : i32
    %1 = arith.extui %0 : i1 to i32
    %c0_i32_0 = arith.constant 0 : i32
    %2 = arith.cmpi ne, %1, %c0_i32_0 : i32
    scf.if %2 {
      %cst_21 = arith.constant 0.000000e+00 : f32
      %28 = vector.broadcast %cst_21 : f32 to vector<8x128xf32>
      %c0_22 = arith.constant 0 : index
      %c0_23 = arith.constant 0 : index
      %29 = vector.load %arg5[%c0_22, %c0_23] : memref<8x128xf32, #tpu.memory_space<vmem>>, vector<8x128xf32>
      tpu.vector_store %arg5[%c0_22, %c0_23], %28 {strides = array<i32>} : memref<8x128xf32, #tpu.memory_space<vmem>>, vector<8x128xf32>,
      %cst_24 = arith.constant 0.000000e+00 : f32
      %30 = vector.broadcast %cst_24 : f32 to vector<8x128xf32>
      %c0_25 = arith.constant 0 : index
      %c0_26 = arith.constant 0 : index
      %31 = vector.load %arg6[%c0_25, %c0_26] : memref<8x128xf32, #tpu.memory_space<vmem>>, vector<8x128xf32>
      tpu.vector_store %arg6[%c0_25, %c0_26], %30 {strides = array<i32>} : memref<8x128xf32, #tpu.memory_space<vmem>>, vector<8x128xf32>,
      %cst_27 = arith.constant 0.000000e+00 : f32
      %32 = vector.broadcast %cst_27 : f32 to vector<8x128xf32>
      %c0_28 = arith.constant 0 : index
      %c0_29 = arith.constant 0 : index
      %33 = vector.load %arg7[%c0_28, %c0_29] : memref<8x128xf32, #tpu.memory_space<vmem>>, vector<8x128xf32>
      tpu.vector_store %arg7[%c0_28, %c0_29], %32 {strides = array<i32>} : memref<8x128xf32, #tpu.memory_space<vmem>>, vector<8x128xf32>,
    } else {
    }
    %c0 = arith.constant 0 : index
    %c0_1 = arith.constant 0 : index
    %3 = vector.load %arg2[%c0, %c0_1] : memref<16x128xf32, #tpu.memory_space<vmem>>, vector<16x128xf32>
    %cst = arith.constant 0.000000e+00 : f32
    %4 = vector.broadcast %cst : f32 to vector<16x128xf32>
    %5 = arith.cmpf ogt, %3, %4 : vector<16x128xf32>
    %6 = arith.extui %5 : vector<16x128xi1> to vector<16x128xi32>
    %7 = arith.sitofp %6 : vector<16x128xi32> to vector<16x128xf32>
    %c0_2 = arith.constant 0 : index
    %c0_3 = arith.constant 0 : index
    %8 = vector.load %arg3[%c0_2, %c0_3] : memref<16x128xf32, #tpu.memory_space<vmem>>, vector<16x128xf32>
    %c0_4 = arith.constant 0 : index
    %c0_5 = arith.constant 0 : index
    %9 = vector.load %arg5[%c0_4, %c0_5] : memref<8x128xf32, #tpu.memory_space<vmem>>, vector<8x128xf32>
    %10 = arith.mulf %7, %8 : vector<16x128xf32>
    %11 = vector.shape_cast %10 : vector<16x128xf32> to vector<2x8x128xf32>
    %cst_6 = arith.constant dense<0.000000e+00> : vector<8x128xf32>
    %12 = vector.multi_reduction <add>, %11, %cst_6 [0] : vector<2x8x128xf32> to vector<8x128xf32>
    %13 = arith.addf %9, %12 : vector<8x128xf32>
    %c0_7 = arith.constant 0 : index
    %c0_8 = arith.constant 0 : index
    %14 = vector.load %arg5[%c0_7, %c0_8] : memref<8x128xf32, #tpu.memory_space<vmem>>, vector<8x128xf32>
    tpu.vector_store %arg5[%c0_7, %c0_8], %13 {strides = array<i32>} : memref<8x128xf32, #tpu.memory_space<vmem>>, vector<8x128xf32>,
    %c0_9 = arith.constant 0 : index
    %c0_10 = arith.constant 0 : index
    %15 = vector.load %arg6[%c0_9, %c0_10] : memref<8x128xf32, #tpu.memory_space<vmem>>, vector<8x128xf32>
    %16 = vector.shape_cast %7 : vector<16x128xf32> to vector<2x8x128xf32>
    %cst_11 = arith.constant dense<0.000000e+00> : vector<8x128xf32>
    %17 = vector.multi_reduction <add>, %16, %cst_11 [0] : vector<2x8x128xf32> to vector<8x128xf32>
    %18 = arith.addf %15, %17 : vector<8x128xf32>
    %c0_12 = arith.constant 0 : index
    %c0_13 = arith.constant 0 : index
    %19 = vector.load %arg6[%c0_12, %c0_13] : memref<8x128xf32, #tpu.memory_space<vmem>>, vector<8x128xf32>
    tpu.vector_store %arg6[%c0_12, %c0_13], %18 {strides = array<i32>} : memref<8x128xf32, #tpu.memory_space<vmem>>, vector<8x128xf32>,
    %c0_14 = arith.constant 0 : index
    %c0_15 = arith.constant 0 : index
    %20 = vector.load %arg7[%c0_14, %c0_15] : memref<8x128xf32, #tpu.memory_space<vmem>>, vector<8x128xf32>
    %21 = vector.shape_cast %8 : vector<16x128xf32> to vector<2x8x128xf32>
    %cst_16 = arith.constant dense<0.000000e+00> : vector<8x128xf32>
    %22 = vector.multi_reduction <add>, %21, %cst_16 [0] : vector<2x8x128xf32> to vector<8x128xf32>
    %23 = arith.addf %20, %22 : vector<8x128xf32>
    %c0_17 = arith.constant 0 : index
    %c0_18 = arith.constant 0 : index
    %24 = vector.load %arg7[%c0_17, %c0_18] : memref<8x128xf32, #tpu.memory_space<vmem>>, vector<8x128xf32>
    tpu.vector_store %arg7[%c0_17, %c0_18], %23 {strides = array<i32>} : memref<8x128xf32, #tpu.memory_space<vmem>>, vector<8x128xf32>,
    %c0_i32_19 = arith.constant 0 : i32
    %25 = arith.cmpi eq, %arg1, %c0_i32_19 : i32
    %26 = arith.extui %25 : i1 to i32
    %c0_i32_20 = arith.constant 0 : i32
    %27 = arith.cmpi ne, %26, %c0_i32_20 : i32
    scf.if %27 {
      %c0_21 = arith.constant 0 : index
      %c0_22 = arith.constant 0 : index
      %28 = vector.load %arg5[%c0_21, %c0_22] : memref<8x128xf32, #tpu.memory_space<vmem>>, vector<8x128xf32>
      %c0_23 = arith.constant 0 : index
      %c0_24 = arith.constant 0 : index
      %c0_25 = arith.constant 0 : index
      %c0_26 = arith.constant 0 : index
      %29 = vector.load %arg4[%c0_23, %c0_24, %c0_25, %c0_26] : memref<1x3x8x128xf32, #tpu.memory_space<vmem>>, vector<1x1x8x128xf32>
      %30 = vector.shape_cast %29 : vector<1x1x8x128xf32> to vector<8x128xf32>
      %31 = vector.shape_cast %28 : vector<8x128xf32> to vector<1x1x8x128xf32>
      tpu.vector_store %arg4[%c0_23, %c0_24, %c0_25, %c0_26], %31 {strides = array<i32>} : memref<1x3x8x128xf32, #tpu.memory_space<vmem>>, vector<1x1x8x128xf32>,
      %c0_27 = arith.constant 0 : index
      %c0_28 = arith.constant 0 : index
      %32 = vector.load %arg6[%c0_27, %c0_28] : memref<8x128xf32, #tpu.memory_space<vmem>>, vector<8x128xf32>
      %c0_29 = arith.constant 0 : index
      %c1 = arith.constant 1 : index
      %c0_30 = arith.constant 0 : index
      %c0_31 = arith.constant 0 : index
      %33 = vector.load %arg4[%c0_29, %c1, %c0_30, %c0_31] : memref<1x3x8x128xf32, #tpu.memory_space<vmem>>, vector<1x1x8x128xf32>
      %34 = vector.shape_cast %33 : vector<1x1x8x128xf32> to vector<8x128xf32>
      %35 = vector.shape_cast %32 : vector<8x128xf32> to vector<1x1x8x128xf32>
      tpu.vector_store %arg4[%c0_29, %c1, %c0_30, %c0_31], %35 {strides = array<i32>} : memref<1x3x8x128xf32, #tpu.memory_space<vmem>>, vector<1x1x8x128xf32>,
      %c0_32 = arith.constant 0 : index
      %c0_33 = arith.constant 0 : index
      %36 = vector.load %arg7[%c0_32, %c0_33] : memref<8x128xf32, #tpu.memory_space<vmem>>, vector<8x128xf32>
      %c0_34 = arith.constant 0 : index
      %c2 = arith.constant 2 : index
      %c0_35 = arith.constant 0 : index
      %c0_36 = arith.constant 0 : index
      %37 = vector.load %arg4[%c0_34, %c2, %c0_35, %c0_36] : memref<1x3x8x128xf32, #tpu.memory_space<vmem>>, vector<1x1x8x128xf32>
      %38 = vector.shape_cast %37 : vector<1x1x8x128xf32> to vector<8x128xf32>
      %39 = vector.shape_cast %36 : vector<8x128xf32> to vector<1x1x8x128xf32>
      tpu.vector_store %arg4[%c0_34, %c2, %c0_35, %c0_36], %39 {strides = array<i32>} : memref<1x3x8x128xf32, #tpu.memory_space<vmem>>, vector<1x1x8x128xf32>,
    } else {
    }
    return
  }
  func.func @transform_0(%arg0: i32, %arg1: i32) -> (i32, i32) {
    %c1_i32 = arith.constant 1 : i32
    %0 = arith.muli %arg0, %c1_i32 : i32
    %1 = arith.addi %0, %arg1 : i32
    %c0_i32 = arith.constant 0 : i32
    %c0_i32_0 = arith.constant 0 : i32
    return %1, %c0_i32 : i32, i32
  }
  func.func @transform_1(%arg0: i32, %arg1: i32) -> (i32, i32) {
    %c1_i32 = arith.constant 1 : i32
    %0 = arith.muli %arg0, %c1_i32 : i32
    %1 = arith.addi %0, %arg1 : i32
    %c0_i32 = arith.constant 0 : i32
    %c0_i32_0 = arith.constant 0 : i32
    return %1, %c0_i32 : i32, i32
  }
  func.func @transform_2(%arg0: i32, %arg1: i32) -> (i32, i32, i32, i32) {
    %c0_i32 = arith.constant 0 : i32
    %c0_i32_0 = arith.constant 0 : i32
    %c0_i32_1 = arith.constant 0 : i32
    %c0_i32_2 = arith.constant 0 : i32
    return %arg0, %c0_i32, %c0_i32_0, %c0_i32_1 : i32, i32, i32, i32
  }
}

</mosaic_0001>

<llo_original>
// kernel: tpu_custom_call.1
$region0: #{tpu_custom_call.1}
  #allocation0 [shape = 'u32[]', space=smem, size = 0x4, offset = 0x4, fixed_abs, tag = 'smem constant byte address 0x4 - core index']
  #allocation1 [shape = 'u32[144,128]{1,0:T(1,128)}', space=vmem, size = 0x12000, scoped, tag = 'internal scratch']
  #allocation2 [shape = 'f32[8,128]{1,0:T(8,128)}', space=vmem, size = 0x1000, scoped, tag = 'scratch operand']
  #allocation3 [shape = 'f32[8,128]{1,0:T(8,128)}', space=vmem, size = 0x1000, scoped, tag = 'scratch operand']
  #allocation4 [shape = 'f32[8,128]{1,0:T(8,128)}', space=vmem, size = 0x1000, scoped, tag = 'scratch operand']
  %s0 = inlined_call_operand.hbm [shape: f32[16,128], index: 0, kind: input, shape index: {}]
  %s1 = inlined_call_operand.hbm [shape: f32[16,128], index: 1, kind: input, shape index: {}]
  %s2 = inlined_call_operand.hbm [shape: f32[1,3,8,128], index: 2, kind: output, shape index: {}]
  %s3 = sld [smem:[#allocation0]]
  $region34: #{tpu_custom_call.1} parent=0
    _
  %s5 = ssub.s32 1, %s3
  %s6 = scalar_select 0, %s5, %s3
  $region1: #{tpu_custom_call.1} parent=0
    #allocation5 [shape = 'u8[8192]{0}', space=vmem, size = 0x2000, scoped, tag = 'input window, operand 0, single buffered']
    #allocation6 [shape = 's32[1]{0}', space=sflag, size = 0x4, scoped, tag = 'scoped memory for tpu_custom_call.1']
    #allocation7 [shape = 's32[1]{0}', space=sflag, size = 0x4, scoped, tag = 'scoped memory for tpu_custom_call.1']
    #allocation8 [shape = 'u8[8192]{0}', space=vmem, size = 0x2000, scoped, tag = 'input window, operand 1, single buffered']
    #allocation9 [shape = 's32[1]{0}', space=sflag, size = 0x4, scoped, tag = 'scoped memory for tpu_custom_call.1']
    #allocation10 [shape = 'u8[12288]{0}', space=vmem, size = 0x3000, scoped, tag = 'output window, operand 0, single buffered']
    %7 = vsyncpa [#allocation6], 0
    %8 = vsyncpa [#allocation9], 0
    %9 = vsyncpa [#allocation7], 0
    // Predicated region
    $region2: #{tpu_custom_call.1} parent=1 // pred_check
      _
    $region3: #{tpu_custom_call.1} parent=1 // pred_check_branch
      %11 = sbr.rel (0) target = $region5
    $region4: #{tpu_custom_call.1} parent=1 // pred_region
      %s12 = sadd.s32 0, 0
      %s13 = smul.u32 2, %s12
      %s15 = ssub.s32 256, 256
      %16 = vsyncadd [#allocation6], %s15
      %s17 = smul.addr %s13, 128
      %s18 = scalar_lea.hbm %s0, %s17
      %s19 = sshll.u32 [#allocation5], 4
      %s20 = int_to_ptr.vmem [resolvable:$true] %s19
      %25 = dma.hbm_to_vmem [thread:$0]  %s18, 256, %s20, [#allocation6], 128, 128, 8
    $region5: #{tpu_custom_call.1} parent=1 // pred_fallthru
      _
    // Predicated region
    $region6: #{tpu_custom_call.1} parent=1 // pred_check
      _
    $region7: #{tpu_custom_call.1} parent=1 // pred_check_branch
      %27 = sbr.rel (0) target = $region9
    $region8: #{tpu_custom_call.1} parent=1 // pred_region
      %s28 = sadd.s32 0, 0
      %s29 = smul.u32 2, %s28
      %s31 = ssub.s32 256, 256
      %32 = vsyncadd [#allocation9], %s31
      %s33 = smul.addr %s29, 128
      %s34 = scalar_lea.hbm %s1, %s33
      %s35 = sshll.u32 [#allocation8], 4
      %s36 = int_to_ptr.vmem [resolvable:$true] %s35
      %41 = dma.hbm_to_vmem [thread:$0]  %s34, 256, %s36, [#allocation9], 128, 128, 8
    $region9: #{tpu_custom_call.1} parent=1 // pred_fallthru
      _
    // Predicated region
    $region10: #{tpu_custom_call.1} parent=1 // pred_check
      _
    $region11: #{tpu_custom_call.1} parent=1 // pred_check_branch
      %43 = sbr.rel (0) target = $region13
    $region12: #{tpu_custom_call.1} parent=1 // pred_region
      %44 = dma.done [#allocation6], 256
    $region13: #{tpu_custom_call.1} parent=1 // pred_fallthru
      _
    // Predicated region
    $region14: #{tpu_custom_call.1} parent=1 // pred_check
      _
    $region15: #{tpu_custom_call.1} parent=1 // pred_check_branch
      %46 = sbr.rel (0) target = $region17
    $region16: #{tpu_custom_call.1} parent=1 // pred_region
      %47 = dma.done [#allocation9], 256
    $region17: #{tpu_custom_call.1} parent=1 // pred_fallthru
      _
    %s48 = sadd.s32 0, 0
    %s49 = smul.u32 2, %s48
    %s50 = sadd.s32 0, 0
    %s51 = smul.u32 2, %s50
    %p52 = scmp.eq.s32.totalorder 0, 0
    // Predicated region
    $region18: #{tpu_custom_call.1} parent=1 // pred_check
      %p53 = pneg %p52
    $region19: #{tpu_custom_call.1} parent=1 // pred_check_branch
      %55 = sbr.rel (%p53) target = $region21
    $region20: #{tpu_custom_call.1} parent=1 // pred_region
      %56 = vst [vmem:[#allocation2] sm:$0xff] 0.0
      %57 = vst [vmem:[#allocation3] sm:$0xff] 0.0
      %58 = vst [vmem:[#allocation4] sm:$0xff] 0.0
    $region21: #{tpu_custom_call.1} parent=1 // pred_fallthru
      _
    %v59 = vld [vmem:[#allocation5] sm:$0xff]
    %v60 = vld [vmem:[#allocation5 + $0x8] sm:$0xff]
    %vm61 = vcmp.gt.f32.partialorder %v59, 0.0
    %vm62 = vcmp.gt.f32.partialorder %v60, 0.0
    %v63 = vsel %vm61, 1, 0
    %v64 = vsel %vm62, 1, 0
    %v65 = vcvt.s32.f32 %v63
    %v66 = vcvt.s32.f32 %v64
    %v67 = vld [vmem:[#allocation8] sm:$0xff]
    %v68 = vld [vmem:[#allocation8 + $0x8] sm:$0xff]
    %v69 = vld [vmem:[#allocation2] sm:$0xff]
    %v70 = vmul.f32 %v65, %v67
    %v71 = vmul.f32 %v66, %v68
    %v72 = vadd.f32 %v70, %v71
    %v73 = vadd.f32 %v69, %v72
    %74 = vst [vmem:[#allocation2] sm:$0xff] %v73
    %v75 = vld [vmem:[#allocation3] sm:$0xff]
    %v76 = vadd.f32 %v65, %v66
    %v77 = vadd.f32 %v75, %v76
    %78 = vst [vmem:[#allocation3] sm:$0xff] %v77
    %v79 = vld [vmem:[#allocation4] sm:$0xff]
    %v80 = vadd.f32 %v67, %v68
    %v81 = vadd.f32 %v79, %v80
    %82 = vst [vmem:[#allocation4] sm:$0xff] %v81
    // Predicated region
    $region22: #{tpu_custom_call.1} parent=1 // pred_check
      %p83 = pneg %p52
    $region23: #{tpu_custom_call.1} parent=1 // pred_check_branch
      %85 = sbr.rel (%p83) target = $region25
    $region24: #{tpu_custom_call.1} parent=1 // pred_region
      %v86 = vld [vmem:[#allocation2] sm:$0xff]
      %87 = vst [vmem:[#allocation10] sm:$0xff] %v86
      %v88 = vld [vmem:[#allocation3] sm:$0xff]
      %s89 = scalar_lea.vmem [#allocation10], 8
      %90 = vst [vmem:[%s89] sm:$0xff] %v88
      %v91 = vld [vmem:[#allocation4] sm:$0xff]
      %s92 = scalar_lea.vmem [#allocation10], 16
      %93 = vst [vmem:[%s92] sm:$0xff] %v91
    $region25: #{tpu_custom_call.1} parent=1 // pred_fallthru
      _
    // Predicated region
    $region26: #{tpu_custom_call.1} parent=1 // pred_check
      _
    $region27: #{tpu_custom_call.1} parent=1 // pred_check_branch
      %95 = sbr.rel (0) target = $region29
    $region28: #{tpu_custom_call.1} parent=1 // pred_region
      %s97 = ssub.s32 384, 384
      %98 = vsyncadd [#allocation7], %s97
      %s99 = sshll.u32 [#allocation10], 4
      %s100 = int_to_ptr.vmem [resolvable:$true] %s99
      %105 = dma.vmem_to_hbm [thread:$0]  %s100, 384, %s2, [#allocation7], 128, 128, 8
    $region29: #{tpu_custom_call.1} parent=1 // pred_fallthru
      _
    // Predicated region
    $region30: #{tpu_custom_call.1} parent=1 // pred_check
      _
    $region31: #{tpu_custom_call.1} parent=1 // pred_check_branch
      %107 = sbr.rel (0) target = $region33
    $region32: #{tpu_custom_call.1} parent=1 // pred_region
      %108 = dma.done [#allocation7], 384
    $region33: #{tpu_custom_call.1} parent=1 // pred_fallthru
      _
    %109 = vsyncpa [#allocation6], 1
    %110 = vsyncpa [#allocation9], 1
    %111 = vsyncpa [#allocation7], 1

</llo_original>
